<compile_context>
chip_gen: v6e
topology: v6e:2x2x1
jax: 0.10.0
libtpu: 0.0.40
codegen_flags: <defaults>
</compile_context>

<pallas_src>
import jax
import jax.numpy as jnp
from jax.experimental import pallas as pl
from jax.experimental.pallas import tpu as pltpu

_LANE = 128
_MAX_COLS = 2048                       # widest lane-dense slab width considered
_TILE_BYTES = 2 * 1024 * 1024          # 2 MiB tile: 4 live buffers = 8 MiB VMEM
_MATERIALIZE_THRESHOLD_BYTES = 1 << 20  # below this, the free reshape wins


def _copy_kernel(p_ref, o_ref):
    # Straight lane-dense tile copy: full-vreg unmasked stores.
    o_ref[...] = p_ref[...]


def _sublane_multiple(itemsize: int) -> int:
    # Sub-32-bit dtypes pack along sublanes -> need proportionally more rows.
    bits = itemsize * 8
    return 8 * max(1, 32 // bits)


def _choose_tiling(n: int, itemsize: int):
    """Pick a lane-dense (rows, cols) slab and a row tile for the copy."""
    # Widest multiple of 128 (<= _MAX_COLS) that divides numel.
    cols = _LANE
    cand = min(_MAX_COLS, (n // _LANE) * _LANE)
    while cand >= _LANE:
        if n % cand == 0:
            cols = cand
            break
        cand -= _LANE
    rows = n // cols

    sub = _sublane_multiple(itemsize)
    budget_rows = max(sub, (_TILE_BYTES // (cols * itemsize)) // sub * sub)

    if rows <= budget_rows:
        tile_rows = rows                      # single full-extent tile for now
    else:
        # Prefer a divisor of rows (no masked boundary tile), accepting down
        # to half the byte budget before falling back to the budget cap.
        tile_rows = budget_rows
        tr = (budget_rows // sub) * sub
        floor = max(sub, budget_rows // 2)
        while tr >= floor:
            if rows % tr == 0:
                tile_rows = tr
                break
            tr -= sub

    # v7x: ensure >=2 grid tiles so both TensorCores get a DMA stream.
    if pl.cdiv(rows, tile_rows) < 2 and rows >= 2 * sub:
        tile_rows = ((pl.cdiv(rows, 2) + sub - 1) // sub) * sub

    return rows, cols, tile_rows, pl.cdiv(rows, tile_rows)


def learnable_parameter_forward(params: jax.Array, *,
                                force_materialize: bool = False) -> jax.Array:
    """Equivalent of LearnableParameterLayer.forward(): params.unsqueeze(0)."""
    out_shape = (1,) + params.shape
    n = params.size
    itemsize = params.dtype.itemsize

    lane_dense = n > 0 and n % _LANE == 0
    # unsqueeze(0) is a pure view: unless a materializing copy is explicitly
    # requested or the tensor is large enough to benefit from a pipelined
    # copy, the metadata-only reshape is strictly cheaper (a kernel would only
    # add a 2*n-byte HBM round trip plus launch/grid overhead).
    if not lane_dense:
        return params.reshape(out_shape)
    if not force_materialize and n * itemsize <= _MATERIALIZE_THRESHOLD_BYTES:
        return params.reshape(out_shape)

    rows, cols, tile_rows, num_tiles = _choose_tiling(n, itemsize)
    flat = params.reshape(rows, cols)  # metadata-only reshape

    out2d = pl.pallas_call(
        _copy_kernel,
        out_shape=jax.ShapeDtypeStruct((rows, cols), params.dtype),
        grid=(num_tiles,),
        in_specs=[pl.BlockSpec((tile_rows, cols), lambda i: (i, 0))],
        out_specs=pl.BlockSpec((tile_rows, cols), lambda i: (i, 0)),
        compiler_params=pltpu.CompilerParams(
            dimension_semantics=("parallel",),
        ),
        cost_estimate=pl.CostEstimate(
            flops=0, transcendentals=0,
            bytes_accessed=2 * n * itemsize),
    )(flat)
    return out2d.reshape(out_shape)  # metadata-only reshape


class LearnableParameterLayer:
    """Thin JAX-side wrapper mirroring the torch module's constructor."""

    def __init__(self, shape, init_structure=None):
        self.shape = tuple(shape)
        if init_structure is None:
            # torch default: zeros(shape) (float32).
            self.params = jnp.zeros(self.shape, dtype=jnp.float32)
        else:
            # torch.from_numpy preserves the source dtype; mirror that here.
            self.params = jnp.asarray(init_structure)

    def __call__(self, input_=None, *, force_materialize=False):
        # input_ is ignored, exactly as in the reference module.
        return learnable_parameter_forward(
            self.params, force_materialize=force_materialize)


if __name__ == "__main__":
    key = jax.random.PRNGKey(0)

    # 1) Small (C, H, W) = (4, 16, 16) parameter: default path is the free
    #    metadata reshape (4 KiB << 1 MiB threshold).
    shape = (4, 16, 16)
    init = jax.random.normal(key, shape, dtype=jnp.float32)
    layer = LearnableParameterLayer(shape, init_structure=init)
    out = jax.block_until_ready(layer(None))
    ref = layer.params[None, ...]
    assert out.shape == (1, 4, 16, 16), out.shape
    assert out.dtype == ref.dtype
    assert jnp.array_equal(out, ref), "reshape-path output mismatch"

    # 2) Force-materialized Pallas copy on a lane-dense (8, 64, 128) parameter
    #    (256 KiB slab -> cols=2048, rows=32, split into 2 tiles).
    shape2 = (8, 64, 128)
    init2 = jax.random.normal(jax.random.PRNGKey(0), shape2, dtype=jnp.float32)
    layer2 = LearnableParameterLayer(shape2, init_structure=init2)
    out2 = jax.block_until_ready(layer2(None, force_materialize=True))
    ref2 = layer2.params[None, ...]
    assert out2.shape == (1,) + shape2, out2.shape
    assert jnp.array_equal(out2, ref2), "Pallas copy output mismatch"

    # 3) Parameter above the 1 MiB threshold: default path takes the kernel
    #    (1.25 MiB -> cols=2048, rows=160, 2 tiles of 80 rows).
    shape3 = (16, 128, 160)
    init3 = jax.random.normal(jax.random.PRNGKey(0), shape3, dtype=jnp.float32)
    layer3 = LearnableParameterLayer(shape3, init_structure=init3)
    out3 = jax.block_until_ready(layer3(None))
    ref3 = layer3.params[None, ...]
    assert out3.shape == (1,) + shape3, out3.shape
    assert jnp.array_equal(out3, ref3), "threshold-path output mismatch"

    # 4) Torch-default (zeros) constructor path.
    zlayer = LearnableParameterLayer((2, 8, 8))
    zout = jax.block_until_ready(zlayer(None))
    assert zout.shape == (1, 2, 8, 8), zout.shape
    assert jnp.array_equal(zout, jnp.zeros((1, 2, 8, 8), jnp.float32))

    print("KERNEL_OK")
</pallas_src>

<mosaic_0001>
module attributes {stable_mosaic.version = 11 : i64} {
  func.func @_copy_kernel(%arg0: i32, %arg1: memref<16x2048xf32, #tpu.memory_space<vmem>>, %arg2: memref<16x2048xf32, #tpu.memory_space<vmem>>) attributes {dimension_semantics = [#tpu.dimension_semantics<parallel>], iteration_bounds = array<i64: 2>, scalar_prefetch = 0 : i64, scratch_operands = 0 : i64, tpu.core_type = #tpu.core_type<tc>, window_params = [{transform_indices = @transform_0, window_bounds = array<i64: 16, 2048>}, {transform_indices = @transform_1, window_bounds = array<i64: 16, 2048>}]} {
    %c0 = arith.constant 0 : index
    %c0_0 = arith.constant 0 : index
    %0 = vector.load %arg1[%c0, %c0_0] : memref<16x2048xf32, #tpu.memory_space<vmem>>, vector<16x2048xf32>
    %c0_1 = arith.constant 0 : index
    %c0_2 = arith.constant 0 : index
    %1 = vector.load %arg2[%c0_1, %c0_2] : memref<16x2048xf32, #tpu.memory_space<vmem>>, vector<16x2048xf32>
    tpu.vector_store %arg2[%c0_1, %c0_2], %0 {strides = array<i32>} : memref<16x2048xf32, #tpu.memory_space<vmem>>, vector<16x2048xf32>,
    return
  }
  func.func @transform_0(%arg0: i32) -> (i32, i32) {
    %c0_i32 = arith.constant 0 : i32
    %c0_i32_0 = arith.constant 0 : i32
    return %arg0, %c0_i32 : i32, i32
  }
  func.func @transform_1(%arg0: i32) -> (i32, i32) {
    %c0_i32 = arith.constant 0 : i32
    %c0_i32_0 = arith.constant 0 : i32
    return %arg0, %c0_i32 : i32, i32
  }
}

</mosaic_0001>

<llo_original>
// kernel: tpu_custom_call.1
$region0: #{tpu_custom_call.1}
  #allocation0 [shape = 'u32[]', space=smem, size = 0x4, offset = 0x4, fixed_abs, tag = 'smem constant byte address 0x4 - core index']
  #allocation1 [shape = 'u32[144,128]{1,0:T(1,128)}', space=vmem, size = 0x12000, scoped, tag = 'internal scratch']
  %s0 = inlined_call_operand.hbm [shape: f32[32,2048], index: 0, kind: input, shape index: {}]
  %s1 = inlined_call_operand.hbm [shape: f32[32,2048], index: 1, kind: output, shape index: {}]
  %s2 = sld [smem:[#allocation0]]
  $region41: #{tpu_custom_call.1} parent=0
    _
  %s4 = ssub.s32 1, %s2
  %s5 = scalar_select 0, %s4, %s2
  $region1: #{tpu_custom_call.1} parent=0
    #allocation2 [shape = 'u8[262144]{0}', space=vmem, size = 0x40000, scoped, tag = 'input window, operand 0']
    #allocation3 [shape = 's32[2]{0}', space=sflag, size = 0x8, scoped, tag = 'scoped memory for tpu_custom_call.1']
    #allocation4 [shape = 's32[2]{0}', space=sflag, size = 0x8, scoped, tag = 'scoped memory for tpu_custom_call.1']
    #allocation5 [shape = 'u8[262144]{0}', space=vmem, size = 0x40000, scoped, tag = 'output window, operand 0']
    %6 = vsyncpa [#allocation3], 0
    %s7 = scalar_lea.sflag [#allocation3], 1
    %8 = vsyncpa %s7, 0
    %9 = vsyncpa [#allocation4], 0
    %s10 = scalar_lea.sflag [#allocation4], 1
    %11 = vsyncpa %s10, 0
    loop: start=0, step=1, limit=4
    $region2: #{tpu_custom_call.1} parent=1 // loop_pre_header
      _
    $region3: #{tpu_custom_call.1} parent=1 // loop_header
      %s13 = sphi 0, %s17
      %p14 = scmp.ge.s32.totalorder %s13, 4
      %s23 = sphi 0, %s25
      %s26 = sphi 0, %s23
      %s27 = sphi 0, %s26
      %s43 = sphi 0, %s27
      %s49 = sphi 0, %s51
      %s52 = sphi 0, %s49
      %s53 = sphi 0, %s52
      %s69 = sphi 0, %s53
    $region4: #{tpu_custom_call.1} parent=1 // loop_header_branch
      %16 = sbr.rel (%p14) target = $region8
    $region5: #{tpu_custom_call.1} parent=1 // loop_body
      %s18 = ssub.s32 %s13, 1
      %s19 = ssub.s32 %s13, 2
      %s20 = sadd.s32 %s13, 1
      %s21 = ssub.s32 %s13, %s20
      %p22 = scmp.eq.s32.totalorder %s21, 0
      %s24 = sadd.s32 %s23, 1
      %s25 = scalar_select %p22, %s23, %s24
      %p28 = pneg %p22
      %p29 = scmp.eq.s32.totalorder %s13, 1
      %p30 = por %p28, %p29
      %p31 = scmp.ne.s32.totalorder %s23, %s26
      %p32 = scmp.eq.s32.totalorder %s13, 0
      %p33 = por %p31, %p32
      %p34 = scmp.ne.s32.totalorder %s23, %s26
      %p35 = scmp.eq.s32.totalorder %s18, 1
      %p36 = por %p34, %p35
      %p37 = scmp.ne.s32.totalorder %s26, %s27
      %p38 = scmp.eq.s32.totalorder %s18, 0
      %p39 = por %p37, %p38
      %p40 = scmp.ne.s32.totalorder %s26, %s27
      %p41 = scmp.eq.s32.totalorder %s19, 1
      %p42 = por %p40, %p41
      %p44 = scmp.ne.s32.totalorder %s27, %s43
      %p45 = scmp.eq.s32.totalorder %s19, 0
      %p46 = por %p44, %p45
      %s47 = ssub.s32 %s13, %s20
      %p48 = scmp.eq.s32.totalorder %s47, 0
      %s50 = sadd.s32 %s49, 1
      %s51 = scalar_select %p48, %s49, %s50
      %p54 = pneg %p48
      %p55 = scmp.eq.s32.totalorder %s13, 1
      %p56 = por %p54, %p55
      %p57 = scmp.ne.s32.totalorder %s49, %s52
      %p58 = scmp.eq.s32.totalorder %s13, 0
      %p59 = por %p57, %p58
      %p60 = scmp.ne.s32.totalorder %s49, %s52
      %p61 = scmp.eq.s32.totalorder %s18, 1
      %p62 = por %p60, %p61
      %p63 = scmp.ne.s32.totalorder %s52, %s53
      %p64 = scmp.eq.s32.totalorder %s18, 0
      %p65 = por %p63, %p64
      %p66 = scmp.ne.s32.totalorder %s52, %s53
      %p67 = scmp.eq.s32.totalorder %s19, 1
      %p68 = por %p66, %p67
      %p70 = scmp.ne.s32.totalorder %s53, %s69
      %p71 = scmp.eq.s32.totalorder %s19, 0
      %p72 = por %p70, %p71
      %p73 = scmp.le.s32.totalorder 1, %s13
      %p74 = scmp.lt.s32.totalorder %s13, 3
      %p75 = pnand %p73, %p74
      %p76 = pneg %p75
      // Predicated region
      $region9: #{tpu_custom_call.1} parent=5 // pred_check
        _
      $region10: #{tpu_custom_call.1} parent=5 // pred_check_branch
        %78 = sbr.rel (%p75) target = $region12
      $region11: #{tpu_custom_call.1} parent=5 // pred_region
        %s79 = ssub.s32 %s13, 1
      $region12: #{tpu_custom_call.1} parent=5 // pred_fallthru
        _
      %p80 = scmp.lt.s32.totalorder %s13, 2
      // Predicated region
      $region13: #{tpu_custom_call.1} parent=5 // pred_check
        %p81 = pneg %p80
      $region14: #{tpu_custom_call.1} parent=5 // pred_check_branch
        %83 = sbr.rel (%p81) target = $region16
      $region15: #{tpu_custom_call.1} parent=5 // pred_region
        // Predicated region
        $region17: #{tpu_custom_call.1} parent=15 // pred_check
          %p84 = pneg %p33
        $region18: #{tpu_custom_call.1} parent=15 // pred_check_branch
          %86 = sbr.rel (%p84) target = $region20
        $region19: #{tpu_custom_call.1} parent=15 // pred_region
          %s87 = sand.u32 %s23, 1
          %s88 = scalar_lea.sflag [#allocation3], %s87
          %s89 = sand.u32 %s23, 1
          %s90 = smul.addr %s89, 256
          %s91 = scalar_lea.vmem [#allocation2], %s90
          %s92 = smul.u32 2, %s13
          %s94 = ssub.s32 4096, 4096
          %95 = vsyncadd %s88, %s94
          %s96 = smul.addr %s92, 16
          %s97 = smul.addr %s96, 128
          %s98 = scalar_lea.hbm %s0, %s97
          %s99 = sshll.u32 %s91, 4
          %s100 = int_to_ptr.vmem [resolvable:$true] %s99
          %105 = dma.hbm_to_vmem [thread:$0]  %s98, 4096, %s100, %s88, 2048, 2048, 128
        $region20: #{tpu_custom_call.1} parent=15 // pred_fallthru
          _
      $region16: #{tpu_custom_call.1} parent=5 // pred_fallthru
        _
      %p106 = scmp.le.s32.totalorder 1, %s13
      %p107 = scmp.lt.s32.totalorder %s13, 3
      %p108 = pnand %p106, %p107
      %p109 = pneg %p108
      // Predicated region
      $region21: #{tpu_custom_call.1} parent=5 // pred_check
        _
      $region22: #{tpu_custom_call.1} parent=5 // pred_check_branch
        %111 = sbr.rel (%p108) target = $region24
      $region23: #{tpu_custom_call.1} parent=5 // pred_region
        %s112 = ssub.s32 %s13, 1
        %s113 = sand.u32 %s26, 1
        %s114 = scalar_lea.sflag [#allocation3], %s113
        %s115 = sand.u32 %s26, 1
        %s116 = smul.addr %s115, 256
        %s117 = scalar_lea.vmem [#allocation2], %s116
        // Predicated region
        $region25: #{tpu_custom_call.1} parent=23 // pred_check
          %p118 = pneg %p39
        $region26: #{tpu_custom_call.1} parent=23 // pred_check_branch
          %120 = sbr.rel (%p118) target = $region28
        $region27: #{tpu_custom_call.1} parent=23 // pred_region
          %121 = dma.done %s114, 4096
        $region28: #{tpu_custom_call.1} parent=23 // pred_fallthru
          _
        %s122 = sand.u32 %s26, 1
        %s123 = scalar_lea.sflag [#allocation3], %s122
        %s124 = sand.u32 %s26, 1
        %s125 = smul.addr %s124, 256
        %s126 = scalar_lea.vmem [#allocation2], %s125
        %p127 = pneg %p39
        %p128 = pneg %p36
        %p129 = pneg %p65
        %p130 = pneg %p62
        %s131 = sand.u32 %s52, 1
        %s132 = scalar_lea.sflag [#allocation4], %s131
        %s133 = sand.u32 %s52, 1
        %s134 = smul.addr %s133, 256
        %s135 = scalar_lea.vmem [#allocation5], %s134
        %s136 = smul.u32 2, %s18
        %s137 = smul.u32 2, %s18
        %v138 = vld [vmem:[%s117] sm:$0xff]
        %v139 = vld [vmem:[%s117 + $0x8] sm:$0xff]
        %v140 = vld [vmem:[%s117 + $0x10] sm:$0xff]
        %v141 = vld [vmem:[%s117 + $0x18] sm:$0xff]
        %v142 = vld [vmem:[%s117 + $0x20] sm:$0xff]
        %v143 = vld [vmem:[%s117 + $0x28] sm:$0xff]
        %v144 = vld [vmem:[%s117 + $0x30] sm:$0xff]
        %v145 = vld [vmem:[%s117 + $0x38] sm:$0xff]
        %v146 = vld [vmem:[%s117 + $0x40] sm:$0xff]
        %v147 = vld [vmem:[%s117 + $0x48] sm:$0xff]
        %v148 = vld [vmem:[%s117 + $0x50] sm:$0xff]
        %v149 = vld [vmem:[%s117 + $0x58] sm:$0xff]
        %v150 = vld [vmem:[%s117 + $0x60] sm:$0xff]
        %v151 = vld [vmem:[%s117 + $0x68] sm:$0xff]
        %v152 = vld [vmem:[%s117 + $0x70] sm:$0xff]
        %v153 = vld [vmem:[%s117 + $0x78] sm:$0xff]
        %v154 = vld [vmem:[%s117 + $0x80] sm:$0xff]
        %v155 = vld [vmem:[%s117 + $0x88] sm:$0xff]
        %v156 = vld [vmem:[%s117 + $0x90] sm:$0xff]
        %v157 = vld [vmem:[%s117 + $0x98] sm:$0xff]
        %v158 = vld [vmem:[%s117 + $0xa0] sm:$0xff]
        %v159 = vld [vmem:[%s117 + $0xa8] sm:$0xff]
        %v160 = vld [vmem:[%s117 + $0xb0] sm:$0xff]
        %v161 = vld [vmem:[%s117 + $0xb8] sm:$0xff]
        %v162 = vld [vmem:[%s117 + $0xc0] sm:$0xff]
        %v163 = vld [vmem:[%s117 + $0xc8] sm:$0xff]
        %v164 = vld [vmem:[%s117 + $0xd0] sm:$0xff]
        %v165 = vld [vmem:[%s117 + $0xd8] sm:$0xff]
        %v166 = vld [vmem:[%s117 + $0xe0] sm:$0xff]
        %v167 = vld [vmem:[%s117 + $0xe8] sm:$0xff]
        %v168 = vld [vmem:[%s117 + $0xf0] sm:$0xff]
        %v169 = vld [vmem:[%s117 + $0xf8] sm:$0xff]
        %170 = vst [vmem:[%s135] sm:$0xff] %v138
        %171 = vst [vmem:[%s135 + $0x8] sm:$0xff] %v139
        %172 = vst [vmem:[%s135 + $0x10] sm:$0xff] %v140
        %173 = vst [vmem:[%s135 + $0x18] sm:$0xff] %v141
        %174 = vst [vmem:[%s135 + $0x20] sm:$0xff] %v142
        %175 = vst [vmem:[%s135 + $0x28] sm:$0xff] %v143
        %176 = vst [vmem:[%s135 + $0x30] sm:$0xff] %v144
        %177 = vst [vmem:[%s135 + $0x38] sm:$0xff] %v145
        %178 = vst [vmem:[%s135 + $0x40] sm:$0xff] %v146
        %179 = vst [vmem:[%s135 + $0x48] sm:$0xff] %v147
        %180 = vst [vmem:[%s135 + $0x50] sm:$0xff] %v148
        %181 = vst [vmem:[%s135 + $0x58] sm:$0xff] %v149
        %182 = vst [vmem:[%s135 + $0x60] sm:$0xff] %v150
        %183 = vst [vmem:[%s135 + $0x68] sm:$0xff] %v151
        %184 = vst [vmem:[%s135 + $0x70] sm:$0xff] %v152
        %185 = vst [vmem:[%s135 + $0x78] sm:$0xff] %v153
        %186 = vst [vmem:[%s135 + $0x80] sm:$0xff] %v154
        %187 = vst [vmem:[%s135 + $0x88] sm:$0xff] %v155
        %188 = vst [vmem:[%s135 + $0x90] sm:$0xff] %v156
        %189 = vst [vmem:[%s135 + $0x98] sm:$0xff] %v157
        %190 = vst [vmem:[%s135 + $0xa0] sm:$0xff] %v158
        %191 = vst [vmem:[%s135 + $0xa8] sm:$0xff] %v159
        %192 = vst [vmem:[%s135 + $0xb0] sm:$0xff] %v160
        %193 = vst [vmem:[%s135 + $0xb8] sm:$0xff] %v161
        %194 = vst [vmem:[%s135 + $0xc0] sm:$0xff] %v162
        %195 = vst [vmem:[%s135 + $0xc8] sm:$0xff] %v163
        %196 = vst [vmem:[%s135 + $0xd0] sm:$0xff] %v164
        %197 = vst [vmem:[%s135 + $0xd8] sm:$0xff] %v165
        %198 = vst [vmem:[%s135 + $0xe0] sm:$0xff] %v166
        %199 = vst [vmem:[%s135 + $0xe8] sm:$0xff] %v167
        %200 = vst [vmem:[%s135 + $0xf0] sm:$0xff] %v168
        %201 = vst [vmem:[%s135 + $0xf8] sm:$0xff] %v169
        %s202 = sand.u32 %s52, 1
        %s203 = scalar_lea.sflag [#allocation4], %s202
        %s204 = sand.u32 %s52, 1
        %s205 = smul.addr %s204, 256
        %s206 = scalar_lea.vmem [#allocation5], %s205
        // Predicated region
        $region29: #{tpu_custom_call.1} parent=23 // pred_check
          %p207 = pneg %p62
        $region30: #{tpu_custom_call.1} parent=23 // pred_check_branch
          %209 = sbr.rel (%p207) target = $region32
        $region31: #{tpu_custom_call.1} parent=23 // pred_region
          %s210 = smul.u32 2, %s18
          %s212 = ssub.s32 4096, 4096
          %213 = vsyncadd %s203, %s212
          %s214 = smul.addr %s210, 16
          %s215 = smul.addr %s214, 128
          %s216 = scalar_lea.hbm %s1, %s215
          %s217 = sshll.u32 %s206, 4
          %s218 = int_to_ptr.vmem [resolvable:$true] %s217
          %223 = dma.vmem_to_hbm [thread:$0]  %s218, 4096, %s216, %s203, 2048, 2048, 128
        $region32: #{tpu_custom_call.1} parent=23 // pred_fallthru
          _
      $region24: #{tpu_custom_call.1} parent=5 // pred_fallthru
        _
      %p224 = scmp.le.s32.totalorder 2, %s13
      // Predicated region
      $region33: #{tpu_custom_call.1} parent=5 // pred_check
        %p225 = pneg %p224
      $region34: #{tpu_custom_call.1} parent=5 // pred_check_branch
        %227 = sbr.rel (%p225) target = $region36
      $region35: #{tpu_custom_call.1} parent=5 // pred_region
        %s228 = ssub.s32 %s13, 2
        // Predicated region
        $region37: #{tpu_custom_call.1} parent=35 // pred_check
          %p229 = pneg %p68
        $region38: #{tpu_custom_call.1} parent=35 // pred_check_branch
          %231 = sbr.rel (%p229) target = $region40
        $region39: #{tpu_custom_call.1} parent=35 // pred_region
          %s232 = sand.u32 %s53, 1
          %s233 = scalar_lea.sflag [#allocation4], %s232
          %s234 = sand.u32 %s53, 1
          %s235 = smul.addr %s234, 256
          %s236 = scalar_lea.vmem [#allocation5], %s235
          %237 = dma.done %s233, 4096
        $region40: #{tpu_custom_call.1} parent=35 // pred_fallthru
          _
      $region36: #{tpu_custom_call.1} parent=5 // pred_fallthru
        _
    $region6: #{tpu_custom_call.1} parent=1 // loop_footer
      %s17 = sadd.s32 1, %s13
    $region7: #{tpu_custom_call.1} parent=1 // loop_footer_branch
      %12 = sbr.rel target = $region3
    $region8: #{tpu_custom_call.1} parent=1 // loop_exit
      _
    %238 = vsyncpa [#allocation3], 1
    %s239 = scalar_lea.sflag [#allocation3], 1
    %240 = vsyncpa %s239, 1
    %241 = vsyncpa [#allocation4], 1
    %s242 = scalar_lea.sflag [#allocation4], 1
    %243 = vsyncpa %s242, 1

</llo_original>
